<compile_context>
chip_gen: v7x
topology: tpu7x:2x2x1
jax: 0.10.0
libtpu: 0.0.40
codegen_flags: <defaults>
</compile_context>

<pallas_src>
import functools

import jax
import jax.numpy as jnp
from jax.experimental import pallas as pl
from jax.experimental.pallas import tpu as pltpu


def _round_up(n, m):
    return ((n + m - 1) // m) * m


def ffn_kernel(x_ref, gamma_ref, beta_ref, w1_ref, b1_ref, w2_ref, b2_ref,
               o_ref, acc_ref, xn_ref, *, d_true, d_pad):
    # x_ref: (TM, Dp) f32    gamma/beta/b2: (1, Dp) f32
    # w1: (Dp, TF) bf16      b1: (1, TF) f32
    # w2: (TF, Dp) bf16
    # acc_ref: (TM, Dp) f32 scratch, xn_ref: (TM, Dp) bf16 scratch
    f = pl.program_id(1)

    @pl.when(f == 0)
    def _():
        # --- LayerNorm over the true feature dim (two-pass, padded lanes masked) ---
        x = x_ref[...]
        inv_d = 1.0 / float(d_true)
        mean = jnp.sum(x, axis=-1, keepdims=True) * inv_d
        xc = x - mean
        if d_pad > 0:
            lane = jax.lax.broadcasted_iota(jnp.int32, xc.shape, 1)
            xc_v = jnp.where(lane < d_true, xc, 0.0)
        else:
            xc_v = xc
        var = jnp.sum(xc_v * xc_v, axis=-1, keepdims=True) * inv_d
        # gamma/beta are zero on padded lanes -> xn is 0 there (and w1 pad rows are 0).
        xn = xc * jax.lax.rsqrt(var + 1e-5) * gamma_ref[...] + beta_ref[...]
        xn_ref[...] = xn.astype(jnp.bfloat16)
        acc_ref[...] = jnp.zeros_like(acc_ref)

    # --- Linear -> ReLU -> Linear over one F tile: bf16 MXU operands, f32 accum ---
    h = jnp.dot(xn_ref[...], w1_ref[...],
                preferred_element_type=jnp.float32) + b1_ref[...]
    h = jnp.maximum(h, 0.0)
    acc_ref[...] += jnp.dot(h.astype(jnp.bfloat16), w2_ref[...],
                            preferred_element_type=jnp.float32)

    # --- Final bias + residual: single full-width lane-dense store ---
    @pl.when(f == pl.num_programs(1) - 1)
    def _():
        o_ref[...] = (acc_ref[...] + b2_ref[...] + x_ref[...]).astype(o_ref.dtype)


def prepare_ffn_params(gamma, beta, w1, b1, w2, b2):
    """One-time parameter prep (hoist out of the per-call path): pad feature dims
    to multiples of 128 (lane-dense) and cast matmul weights to bf16."""
    D, F = w1.shape
    Dp, Fp = _round_up(D, 128), _round_up(F, 128)
    pd, pf = Dp - D, Fp - F
    return dict(
        d=D, f=F, dp=Dp, fp=Fp,
        gamma=jnp.pad(jnp.reshape(gamma, (1, D)), ((0, 0), (0, pd))),
        beta=jnp.pad(jnp.reshape(beta, (1, D)), ((0, 0), (0, pd))),
        w1=jnp.pad(w1, ((0, pd), (0, pf))).astype(jnp.bfloat16),
        b1=jnp.pad(jnp.reshape(b1, (1, F)), ((0, 0), (0, pf))),
        w2=jnp.pad(w2, ((0, pf), (0, pd))).astype(jnp.bfloat16),
        b2=jnp.pad(jnp.reshape(b2, (1, D)), ((0, 0), (0, pd))),
    )


def _pick_tiles(n, dp, fp):
    # Row tile: big enough to amortize per-step overhead (512 is near the HBM
    # roofline sweet spot on v5e/v6e), but keep >= 2 row steps for larger N so
    # the "parallel" axis can split across v7x's 2 TensorCores.
    tm = min(512, _round_up(n, 8))
    if n > 256 and _round_up(n, tm) // tm < 2:
        tm = _round_up((n + 1) // 2, 8)
    # Filter tile: keep both weights fully VMEM-resident when small; otherwise
    # tile F so per-step weight blocks + the (TM, TF) hidden temp stay bounded
    # (v7x has only 64 MiB of VMEM).
    weight_bytes = 2 * dp * fp * 2  # w1 + w2 in bf16
    if weight_bytes <= 24 * 1024 * 1024:
        tf = fp
    elif fp % 512 == 0:
        tf = 512
    elif fp % 256 == 0:
        tf = 256
    else:
        tf = 128
    return tm, tf


def _vmem_limit_bytes(tm, dp, tf, f_steps, single_buffer_const):
    cbuf = 1 if single_buffer_const else 2
    wbuf = cbuf if f_steps == 1 else 2
    b = 0
    b += 2 * tm * dp * 4                 # x tile (double-buffered)
    b += 2 * tm * dp * 4                 # out tile (double-buffered)
    b += cbuf * 3 * 8 * dp * 4           # gamma, beta, b2 (sublane-padded rows)
    b += wbuf * 8 * tf * 4               # b1
    b += wbuf * dp * tf * 2              # w1 (bf16)
    b += wbuf * tf * dp * 2              # w2 (bf16)
    b += tm * dp * 4 + tm * dp * 2       # acc (f32) + xn (bf16) scratch
    b += tm * tf * 4 + tm * tf * 2       # h intermediate (f32) + bf16 copy headroom
    limit = int(b * 1.4) + (4 << 20)
    return max(32 << 20, min(limit, 110 << 20))


def transformer_feed_forward_prepared(x, params):
    """x: (B, S, D) float32, params from prepare_ffn_params. Returns (B, S, D)."""
    B, S, D = x.shape
    assert D == params["d"], "hidden size must equal input size for the residual"
    Dp, Fp = params["dp"], params["fp"]
    N = B * S

    TM, TF = _pick_tiles(N, Dp, Fp)
    Np = _round_up(N, TM)
    rows, f_steps = Np // TM, Fp // TF

    needs_pad = (Np != N) or (Dp != D)
    x2 = x.reshape(N, D)
    if needs_pad:
        x2 = jnp.pad(x2, ((0, Np - N), (0, Dp - D)))

    kernel = functools.partial(ffn_kernel, d_true=D, d_pad=Dp - D)

    def run(single_buffer_const):
        const_mode = ({"pipeline_mode": pl.Buffered(1)}
                      if single_buffer_const else {})
        # Weight blocks are grid-invariant only when F is not tiled.
        w_mode = const_mode if f_steps == 1 else {}
        grid_spec = pltpu.PrefetchScalarGridSpec(
            num_scalar_prefetch=0,
            grid=(rows, f_steps),
            in_specs=[
                pl.BlockSpec((TM, Dp), lambda i, f: (i, 0)),                # x
                pl.BlockSpec((1, Dp), lambda i, f: (0, 0), **const_mode),   # gamma
                pl.BlockSpec((1, Dp), lambda i, f: (0, 0), **const_mode),   # beta
                pl.BlockSpec((Dp, TF), lambda i, f: (0, f), **w_mode),      # w1
                pl.BlockSpec((1, TF), lambda i, f: (0, f), **w_mode),       # b1
                pl.BlockSpec((TF, Dp), lambda i, f: (f, 0), **w_mode),      # w2
                pl.BlockSpec((1, Dp), lambda i, f: (0, 0), **const_mode),   # b2
            ],
            out_specs=pl.BlockSpec((TM, Dp), lambda i, f: (i, 0)),
            scratch_shapes=[pltpu.VMEM((TM, Dp), jnp.float32),   # accumulator
                            pltpu.VMEM((TM, Dp), jnp.bfloat16)],  # cached LN result
        )
        return pl.pallas_call(
            kernel,
            out_shape=jax.ShapeDtypeStruct((Np, Dp), x.dtype),
            grid_spec=grid_spec,
            compiler_params=pltpu.CompilerParams(
                dimension_semantics=("parallel", "arbitrary"),
                vmem_limit_bytes=_vmem_limit_bytes(TM, Dp, TF, f_steps,
                                                   single_buffer_const),
            ),
        )(x2, params["gamma"], params["beta"], params["w1"], params["b1"],
          params["w2"], params["b2"])

    try:
        out = run(True)
    except Exception:
        # Fallback for JAX versions without BlockSpec pipeline_mode / Buffered(1).
        out = run(False)

    if needs_pad:
        out = out[:N, :D]
    return out.reshape(B, S, D)


def transformer_feed_forward(x, gamma, beta, w1, b1, w2, b2):
    return transformer_feed_forward_prepared(
        x, prepare_ffn_params(gamma, beta, w1, b1, w2, b2))


def xavier_uniform(key, fan_in, fan_out, dtype=jnp.float32):
    limit = (6.0 / (fan_in + fan_out)) ** 0.5
    return jax.random.uniform(key, (fan_in, fan_out), dtype, -limit, limit)


def reference(x, gamma, beta, w1, b1, w2, b2):
    """Mirrors the kernel numerics (two-pass LN, bf16 matmul operands, f32 accum)."""
    mean = x.mean(-1, keepdims=True)
    xc = x - mean
    var = (xc * xc).mean(-1, keepdims=True)
    xn = xc * jax.lax.rsqrt(var + 1e-5) * gamma[0] + beta[0]
    h = jnp.dot(xn.astype(jnp.bfloat16), w1.astype(jnp.bfloat16),
                preferred_element_type=jnp.float32) + b1[0]
    h = jnp.maximum(h, 0.0)
    y = jnp.dot(h.astype(jnp.bfloat16), w2.astype(jnp.bfloat16),
                preferred_element_type=jnp.float32) + b2[0]
    return y + x


if __name__ == "__main__":
    # Module hyperparameters (hidden_size == input_size for the residual add).
    input_size, filter_size, hidden_size = 32, 64, 32
    B, S = 2, 8

    key = jax.random.PRNGKey(0)
    kx, kw1, kb1, kw2, kb2 = jax.random.split(key, 5)

    x = jax.random.normal(kx, (B, S, input_size), jnp.float32)

    # LayerNorm params (torch defaults: weight=1, bias=0)
    gamma = jnp.ones((1, input_size), jnp.float32)
    beta = jnp.zeros((1, input_size), jnp.float32)

    # Linear weights: xavier_uniform (matches weights_init); biases: torch default
    # uniform(-1/sqrt(fan_in), 1/sqrt(fan_in)).
    w1 = xavier_uniform(kw1, input_size, filter_size)
    b1 = jax.random.uniform(kb1, (1, filter_size), jnp.float32,
                            -1.0 / input_size ** 0.5, 1.0 / input_size ** 0.5)
    w2 = xavier_uniform(kw2, filter_size, hidden_size)
    b2 = jax.random.uniform(kb2, (1, hidden_size), jnp.float32,
                            -1.0 / filter_size ** 0.5, 1.0 / filter_size ** 0.5)

    # One-time parameter prep (hoisted out of the per-call path), then run.
    params = prepare_ffn_params(gamma, beta, w1, b1, w2, b2)
    out = transformer_feed_forward_prepared(x, params)
    out = jax.block_until_ready(out)

    ref = reference(x, gamma, beta, w1, b1, w2, b2)
    assert out.shape == (B, S, hidden_size)
    assert jnp.allclose(out, ref, atol=2e-3, rtol=2e-3), float(jnp.abs(out - ref).max())
    print("KERNEL_OK")
</pallas_src>

<mosaic_0001>
module attributes {stable_mosaic.version = 11 : i64} {
  func.func @ffn_kernel(%arg0: i32, %arg1: i32, %arg2: memref<16x128xf32, #tpu.memory_space<vmem>>, %arg3: memref<1x128xf32, #tpu.memory_space<vmem>>, %arg4: memref<1x128xf32, #tpu.memory_space<vmem>>, %arg5: memref<128x128xbf16, #tpu.memory_space<vmem>>, %arg6: memref<1x128xf32, #tpu.memory_space<vmem>>, %arg7: memref<128x128xbf16, #tpu.memory_space<vmem>>, %arg8: memref<1x128xf32, #tpu.memory_space<vmem>>, %arg9: memref<16x128xf32, #tpu.memory_space<vmem>>, %arg10: memref<16x128xf32, #tpu.memory_space<vmem>>, %arg11: memref<16x128xbf16, #tpu.memory_space<vmem>>) attributes {dimension_semantics = [#tpu.dimension_semantics<parallel>, #tpu.dimension_semantics<arbitrary>], iteration_bounds = array<i64: 1, 1>, scalar_prefetch = 0 : i64, scratch_operands = 2 : i64, tpu.core_type = #tpu.core_type<tc>, window_params = [{transform_indices = @transform_0, window_bounds = array<i64: 16, 128>}, {pipeline_mode = #tpu.pipeline_mode<synchronous>, transform_indices = @transform_1, window_bounds = array<i64: 1, 128>}, {pipeline_mode = #tpu.pipeline_mode<synchronous>, transform_indices = @transform_2, window_bounds = array<i64: 1, 128>}, {pipeline_mode = #tpu.pipeline_mode<synchronous>, transform_indices = @transform_3, window_bounds = array<i64: 128, 128>}, {pipeline_mode = #tpu.pipeline_mode<synchronous>, transform_indices = @transform_4, window_bounds = array<i64: 1, 128>}, {pipeline_mode = #tpu.pipeline_mode<synchronous>, transform_indices = @transform_5, window_bounds = array<i64: 128, 128>}, {pipeline_mode = #tpu.pipeline_mode<synchronous>, transform_indices = @transform_6, window_bounds = array<i64: 1, 128>}, {transform_indices = @transform_7, window_bounds = array<i64: 16, 128>}]} {
    %c0_i32 = arith.constant 0 : i32
    %0 = arith.cmpi eq, %arg1, %c0_i32 : i32
    %1 = arith.extui %0 : i1 to i32
    %c0_i32_0 = arith.constant 0 : i32
    %2 = arith.cmpi ne, %1, %c0_i32_0 : i32
    scf.if %2 {
      %c0_16 = arith.constant 0 : index
      %c0_17 = arith.constant 0 : index
      %20 = vector.load %arg2[%c0_16, %c0_17] : memref<16x128xf32, #tpu.memory_space<vmem>>, vector<16x128xf32>
      %cst_18 = arith.constant dense<0.000000e+00> : vector<16xf32>
      %21 = vector.multi_reduction <add>, %20, %cst_18 [1] : vector<16x128xf32> to vector<16xf32>
      %22 = vector.shape_cast %21 : vector<16xf32> to vector<16x1xf32>
      %cst_19 = arith.constant 3.125000e-02 : f32
      %23 = vector.broadcast %cst_19 : f32 to vector<16x1xf32>
      %24 = arith.mulf %22, %23 : vector<16x1xf32>
      %25 = vector.broadcast %24 : vector<16x1xf32> to vector<16x128xf32>
      %26 = arith.subf %20, %25 : vector<16x128xf32>
      %27 = tpu.iota {dimensions = array<i32: 1>} : vector<16x128xi32>
      %c32_i32 = arith.constant 32 : i32
      %28 = vector.broadcast %c32_i32 : i32 to vector<16x128xi32>
      %29 = arith.cmpi slt, %27, %28 : vector<16x128xi32>
      %cst_20 = arith.constant 0.000000e+00 : f32
      %30 = vector.broadcast %cst_20 : f32 to vector<16x128xf32>
      %31 = arith.select %29, %26, %30 : vector<16x128xi1>, vector<16x128xf32>
      %32 = arith.mulf %31, %31 : vector<16x128xf32>
      %cst_21 = arith.constant dense<0.000000e+00> : vector<16xf32>
      %33 = vector.multi_reduction <add>, %32, %cst_21 [1] : vector<16x128xf32> to vector<16xf32>
      %34 = vector.shape_cast %33 : vector<16xf32> to vector<16x1xf32>
      %cst_22 = arith.constant 3.125000e-02 : f32
      %35 = vector.broadcast %cst_22 : f32 to vector<16x1xf32>
      %36 = arith.mulf %34, %35 : vector<16x1xf32>
      %cst_23 = arith.constant 9.99999974E-6 : f32
      %37 = vector.broadcast %cst_23 : f32 to vector<16x1xf32>
      %38 = arith.addf %36, %37 : vector<16x1xf32>
      %39 = math.rsqrt %38 : vector<16x1xf32>
      %40 = vector.broadcast %39 : vector<16x1xf32> to vector<16x128xf32>
      %41 = arith.mulf %26, %40 : vector<16x128xf32>
      %c0_24 = arith.constant 0 : index
      %c0_25 = arith.constant 0 : index
      %42 = vector.load %arg3[%c0_24, %c0_25] : memref<1x128xf32, #tpu.memory_space<vmem>>, vector<1x128xf32>
      %43 = vector.broadcast %42 : vector<1x128xf32> to vector<16x128xf32>
      %44 = arith.mulf %41, %43 : vector<16x128xf32>
      %c0_26 = arith.constant 0 : index
      %c0_27 = arith.constant 0 : index
      %45 = vector.load %arg4[%c0_26, %c0_27] : memref<1x128xf32, #tpu.memory_space<vmem>>, vector<1x128xf32>
      %46 = vector.broadcast %45 : vector<1x128xf32> to vector<16x128xf32>
      %47 = arith.addf %44, %46 : vector<16x128xf32>
      %48 = arith.truncf %47 : vector<16x128xf32> to vector<16x128xbf16>
      %c0_28 = arith.constant 0 : index
      %c0_29 = arith.constant 0 : index
      %49 = vector.load %arg11[%c0_28, %c0_29] : memref<16x128xbf16, #tpu.memory_space<vmem>>, vector<16x128xbf16>
      tpu.vector_store %arg11[%c0_28, %c0_29], %48 {strides = array<i32>} : memref<16x128xbf16, #tpu.memory_space<vmem>>, vector<16x128xbf16>,
      %cst_30 = arith.constant 0.000000e+00 : f32
      %50 = vector.broadcast %cst_30 : f32 to vector<16x128xf32>
      %c0_31 = arith.constant 0 : index
      %c0_32 = arith.constant 0 : index
      %51 = vector.load %arg10[%c0_31, %c0_32] : memref<16x128xf32, #tpu.memory_space<vmem>>, vector<16x128xf32>
      tpu.vector_store %arg10[%c0_31, %c0_32], %50 {strides = array<i32>} : memref<16x128xf32, #tpu.memory_space<vmem>>, vector<16x128xf32>,
    } else {
    }
    %c0 = arith.constant 0 : index
    %c0_1 = arith.constant 0 : index
    %3 = vector.load %arg11[%c0, %c0_1] : memref<16x128xbf16, #tpu.memory_space<vmem>>, vector<16x128xbf16>
    %c0_2 = arith.constant 0 : index
    %c0_3 = arith.constant 0 : index
    %4 = vector.load %arg5[%c0_2, %c0_3] : memref<128x128xbf16, #tpu.memory_space<vmem>>, vector<128x128xbf16>
    %cst = arith.constant dense<0.000000e+00> : vector<16x128xf32>
    %5 = tpu.matmul %3, %4, %cst {dimension_numbers = #tpu.dot_dimension_numbers<[1], [0], [0], [1], [0, 0, 1, 1], [], []>} : vector<16x128xbf16>, vector<128x128xbf16>, vector<16x128xf32> -> vector<16x128xf32>
    %c0_4 = arith.constant 0 : index
    %c0_5 = arith.constant 0 : index
    %6 = vector.load %arg6[%c0_4, %c0_5] : memref<1x128xf32, #tpu.memory_space<vmem>>, vector<1x128xf32>
    %7 = vector.broadcast %6 : vector<1x128xf32> to vector<16x128xf32>
    %8 = arith.addf %5, %7 : vector<16x128xf32>
    %cst_6 = arith.constant 0.000000e+00 : f32
    %9 = vector.broadcast %cst_6 : f32 to vector<16x128xf32>
    %10 = arith.maximumf %8, %9 : vector<16x128xf32>
    %c0_7 = arith.constant 0 : index
    %c0_8 = arith.constant 0 : index
    %11 = vector.load %arg10[%c0_7, %c0_8] : memref<16x128xf32, #tpu.memory_space<vmem>>, vector<16x128xf32>
    %12 = arith.truncf %10 : vector<16x128xf32> to vector<16x128xbf16>
    %c0_9 = arith.constant 0 : index
    %c0_10 = arith.constant 0 : index
    %13 = vector.load %arg7[%c0_9, %c0_10] : memref<128x128xbf16, #tpu.memory_space<vmem>>, vector<128x128xbf16>
    %cst_11 = arith.constant dense<0.000000e+00> : vector<16x128xf32>
    %14 = tpu.matmul %12, %13, %cst_11 {dimension_numbers = #tpu.dot_dimension_numbers<[1], [0], [0], [1], [0, 0, 1, 1], [], []>} : vector<16x128xbf16>, vector<128x128xbf16>, vector<16x128xf32> -> vector<16x128xf32>
    %15 = arith.addf %11, %14 : vector<16x128xf32>
    %c0_12 = arith.constant 0 : index
    %c0_13 = arith.constant 0 : index
    %16 = vector.load %arg10[%c0_12, %c0_13] : memref<16x128xf32, #tpu.memory_space<vmem>>, vector<16x128xf32>
    tpu.vector_store %arg10[%c0_12, %c0_13], %15 {strides = array<i32>} : memref<16x128xf32, #tpu.memory_space<vmem>>, vector<16x128xf32>,
    %c0_i32_14 = arith.constant 0 : i32
    %17 = arith.cmpi eq, %arg1, %c0_i32_14 : i32
    %18 = arith.extui %17 : i1 to i32
    %c0_i32_15 = arith.constant 0 : i32
    %19 = arith.cmpi ne, %18, %c0_i32_15 : i32
    scf.if %19 {
      %c0_16 = arith.constant 0 : index
      %c0_17 = arith.constant 0 : index
      %20 = vector.load %arg10[%c0_16, %c0_17] : memref<16x128xf32, #tpu.memory_space<vmem>>, vector<16x128xf32>
      %c0_18 = arith.constant 0 : index
      %c0_19 = arith.constant 0 : index
      %21 = vector.load %arg8[%c0_18, %c0_19] : memref<1x128xf32, #tpu.memory_space<vmem>>, vector<1x128xf32>
      %22 = vector.broadcast %21 : vector<1x128xf32> to vector<16x128xf32>
      %23 = arith.addf %20, %22 : vector<16x128xf32>
      %c0_20 = arith.constant 0 : index
      %c0_21 = arith.constant 0 : index
      %24 = vector.load %arg2[%c0_20, %c0_21] : memref<16x128xf32, #tpu.memory_space<vmem>>, vector<16x128xf32>
      %25 = arith.addf %23, %24 : vector<16x128xf32>
      %c0_22 = arith.constant 0 : index
      %c0_23 = arith.constant 0 : index
      %26 = vector.load %arg9[%c0_22, %c0_23] : memref<16x128xf32, #tpu.memory_space<vmem>>, vector<16x128xf32>
      tpu.vector_store %arg9[%c0_22, %c0_23], %25 {strides = array<i32>} : memref<16x128xf32, #tpu.memory_space<vmem>>, vector<16x128xf32>,
    } else {
    }
    return
  }
  func.func @transform_0(%arg0: i32, %arg1: i32) -> (i32, i32) {
    %c0_i32 = arith.constant 0 : i32
    %c0_i32_0 = arith.constant 0 : i32
    return %arg0, %c0_i32 : i32, i32
  }
  func.func @transform_1(%arg0: i32, %arg1: i32) -> (i32, i32) {
    %c0_i32 = arith.constant 0 : i32
    %c0_i32_0 = arith.constant 0 : i32
    %c0_i32_1 = arith.constant 0 : i32
    return %c0_i32, %c0_i32_0 : i32, i32
  }
  func.func @transform_2(%arg0: i32, %arg1: i32) -> (i32, i32) {
    %c0_i32 = arith.constant 0 : i32
    %c0_i32_0 = arith.constant 0 : i32
    %c0_i32_1 = arith.constant 0 : i32
    return %c0_i32, %c0_i32_0 : i32, i32
  }
  func.func @transform_3(%arg0: i32, %arg1: i32) -> (i32, i32) {
    %c0_i32 = arith.constant 0 : i32
    %c0_i32_0 = arith.constant 0 : i32
    return %c0_i32, %arg1 : i32, i32
  }
  func.func @transform_4(%arg0: i32, %arg1: i32) -> (i32, i32) {
    %c0_i32 = arith.constant 0 : i32
    %c0_i32_0 = arith.constant 0 : i32
    return %c0_i32, %arg1 : i32, i32
  }
  func.func @transform_5(%arg0: i32, %arg1: i32) -> (i32, i32) {
    %c0_i32 = arith.constant 0 : i32
    %c0_i32_0 = arith.constant 0 : i32
    return %arg1, %c0_i32 : i32, i32
  }
  func.func @transform_6(%arg0: i32, %arg1: i32) -> (i32, i32) {
    %c0_i32 = arith.constant 0 : i32
    %c0_i32_0 = arith.constant 0 : i32
    %c0_i32_1 = arith.constant 0 : i32
    return %c0_i32, %c0_i32_0 : i32, i32
  }
  func.func @transform_7(%arg0: i32, %arg1: i32) -> (i32, i32) {
    %c0_i32 = arith.constant 0 : i32
    %c0_i32_0 = arith.constant 0 : i32
    return %arg0, %c0_i32 : i32, i32
  }
}

module attributes {stable_mosaic.version = 11 : i64} {
  func.func @ffn_kernel(%arg0: i32, %arg1: i32, %arg2: memref<16x128xf32, #tpu.memory_space<vmem>>, %arg3: memref<1x128xf32, #tpu.memory_space<vmem>>, %arg4: memref<1x128xf32, #tpu.memory_space<vmem>>, %arg5: memref<128x128xbf16, #tpu.memory_space<vmem>>, %arg6: memref<1x128xf32, #tpu.memory_space<vmem>>, %arg7: memref<128x128xbf16, #tpu.memory_space<vmem>>, %arg8: memref<1x128xf32, #tpu.memory_space<vmem>>, %arg9: memref<16x128xf32, #tpu.memory_space<vmem>>, %arg10: memref<16x128xf32, #tpu.memory_space<vmem>>, %arg11: memref<16x128xbf16, #tpu.memory_space<vmem>>) attributes {dimension_semantics = [#tpu.dimension_semantics<parallel>, #tpu.dimension_semantics<arbitrary>], iteration_bounds = array<i64: 1, 1>, scalar_prefetch = 0 : i64, scratch_operands = 2 : i64, tpu.core_type = #tpu.core_type<tc>, window_params = [{transform_indices = @transform_0, window_bounds = array<i64: 16, 128>}, {pipeline_mode = #tpu.pipeline_mode<synchronous>, transform_indices = @transform_1, window_bounds = array<i64: 1, 128>}, {pipeline_mode = #tpu.pipeline_mode<synchronous>, transform_indices = @transform_2, window_bounds = array<i64: 1, 128>}, {transform_indices = @transform_3, window_bounds = array<i64: 128, 128>}, {transform_indices = @transform_4, window_bounds = array<i64: 1, 128>}, {transform_indices = @transform_5, window_bounds = array<i64: 128, 128>}, {pipeline_mode = #tpu.pipeline_mode<synchronous>, transform_indices = @transform_6, window_bounds = array<i64: 1, 128>}, {transform_indices = @transform_7, window_bounds = array<i64: 16, 128>}]} {
    %c0_i32 = arith.constant 0 : i32
    %0 = arith.cmpi eq, %arg1, %c0_i32 : i32
    %1 = arith.extui %0 : i1 to i32
    %c0_i32_0 = arith.constant 0 : i32
    %2 = arith.cmpi ne, %1, %c0_i32_0 : i32
    scf.if %2 {
      %c0_16 = arith.constant 0 : index
      %c0_17 = arith.constant 0 : index
      %20 = vector.load %arg2[%c0_16, %c0_17] : memref<16x128xf32, #tpu.memory_space<vmem>>, vector<16x128xf32>
      %cst_18 = arith.constant dense<0.000000e+00> : vector<16xf32>
      %21 = vector.multi_reduction <add>, %20, %cst_18 [1] : vector<16x128xf32> to vector<16xf32>
      %22 = vector.shape_cast %21 : vector<16xf32> to vector<16x1xf32>
      %cst_19 = arith.constant 3.125000e-02 : f32
      %23 = vector.broadcast %cst_19 : f32 to vector<16x1xf32>
      %24 = arith.mulf %22, %23 : vector<16x1xf32>
      %25 = vector.broadcast %24 : vector<16x1xf32> to vector<16x128xf32>
      %26 = arith.subf %20, %25 : vector<16x128xf32>
      %27 = tpu.iota {dimensions = array<i32: 1>} : vector<16x128xi32>
      %c32_i32 = arith.constant 32 : i32
      %28 = vector.broadcast %c32_i32 : i32 to vector<16x128xi32>
      %29 = arith.cmpi slt, %27, %28 : vector<16x128xi32>
      %cst_20 = arith.constant 0.000000e+00 : f32
      %30 = vector.broadcast %cst_20 : f32 to vector<16x128xf32>
      %31 = arith.select %29, %26, %30 : vector<16x128xi1>, vector<16x128xf32>
      %32 = arith.mulf %31, %31 : vector<16x128xf32>
      %cst_21 = arith.constant dense<0.000000e+00> : vector<16xf32>
      %33 = vector.multi_reduction <add>, %32, %cst_21 [1] : vector<16x128xf32> to vector<16xf32>
      %34 = vector.shape_cast %33 : vector<16xf32> to vector<16x1xf32>
      %cst_22 = arith.constant 3.125000e-02 : f32
      %35 = vector.broadcast %cst_22 : f32 to vector<16x1xf32>
      %36 = arith.mulf %34, %35 : vector<16x1xf32>
      %cst_23 = arith.constant 9.99999974E-6 : f32
      %37 = vector.broadcast %cst_23 : f32 to vector<16x1xf32>
      %38 = arith.addf %36, %37 : vector<16x1xf32>
      %39 = math.rsqrt %38 : vector<16x1xf32>
      %40 = vector.broadcast %39 : vector<16x1xf32> to vector<16x128xf32>
      %41 = arith.mulf %26, %40 : vector<16x128xf32>
      %c0_24 = arith.constant 0 : index
      %c0_25 = arith.constant 0 : index
      %42 = vector.load %arg3[%c0_24, %c0_25] : memref<1x128xf32, #tpu.memory_space<vmem>>, vector<1x128xf32>
      %43 = vector.broadcast %42 : vector<1x128xf32> to vector<16x128xf32>
      %44 = arith.mulf %41, %43 : vector<16x128xf32>
      %c0_26 = arith.constant 0 : index
      %c0_27 = arith.constant 0 : index
      %45 = vector.load %arg4[%c0_26, %c0_27] : memref<1x128xf32, #tpu.memory_space<vmem>>, vector<1x128xf32>
      %46 = vector.broadcast %45 : vector<1x128xf32> to vector<16x128xf32>
      %47 = arith.addf %44, %46 : vector<16x128xf32>
      %48 = arith.truncf %47 : vector<16x128xf32> to vector<16x128xbf16>
      %c0_28 = arith.constant 0 : index
      %c0_29 = arith.constant 0 : index
      %49 = vector.load %arg11[%c0_28, %c0_29] : memref<16x128xbf16, #tpu.memory_space<vmem>>, vector<16x128xbf16>
      tpu.vector_store %arg11[%c0_28, %c0_29], %48 {strides = array<i32>} : memref<16x128xbf16, #tpu.memory_space<vmem>>, vector<16x128xbf16>,
      %cst_30 = arith.constant 0.000000e+00 : f32
      %50 = vector.broadcast %cst_30 : f32 to vector<16x128xf32>
      %c0_31 = arith.constant 0 : index
      %c0_32 = arith.constant 0 : index
      %51 = vector.load %arg10[%c0_31, %c0_32] : memref<16x128xf32, #tpu.memory_space<vmem>>, vector<16x128xf32>
      tpu.vector_store %arg10[%c0_31, %c0_32], %50 {strides = array<i32>} : memref<16x128xf32, #tpu.memory_space<vmem>>, vector<16x128xf32>,
    } else {
    }
    %c0 = arith.constant 0 : index
    %c0_1 = arith.constant 0 : index
    %3 = vector.load %arg11[%c0, %c0_1] : memref<16x128xbf16, #tpu.memory_space<vmem>>, vector<16x128xbf16>
    %c0_2 = arith.constant 0 : index
    %c0_3 = arith.constant 0 : index
    %4 = vector.load %arg5[%c0_2, %c0_3] : memref<128x128xbf16, #tpu.memory_space<vmem>>, vector<128x128xbf16>
    %cst = arith.constant dense<0.000000e+00> : vector<16x128xf32>
    %5 = tpu.matmul %3, %4, %cst {dimension_numbers = #tpu.dot_dimension_numbers<[1], [0], [0], [1], [0, 0, 1, 1], [], []>} : vector<16x128xbf16>, vector<128x128xbf16>, vector<16x128xf32> -> vector<16x128xf32>
    %c0_4 = arith.constant 0 : index
    %c0_5 = arith.constant 0 : index
    %6 = vector.load %arg6[%c0_4, %c0_5] : memref<1x128xf32, #tpu.memory_space<vmem>>, vector<1x128xf32>
    %7 = vector.broadcast %6 : vector<1x128xf32> to vector<16x128xf32>
    %8 = arith.addf %5, %7 : vector<16x128xf32>
    %cst_6 = arith.constant 0.000000e+00 : f32
    %9 = vector.broadcast %cst_6 : f32 to vector<16x128xf32>
    %10 = arith.maximumf %8, %9 : vector<16x128xf32>
    %c0_7 = arith.constant 0 : index
    %c0_8 = arith.constant 0 : index
    %11 = vector.load %arg10[%c0_7, %c0_8] : memref<16x128xf32, #tpu.memory_space<vmem>>, vector<16x128xf32>
    %12 = arith.truncf %10 : vector<16x128xf32> to vector<16x128xbf16>
    %c0_9 = arith.constant 0 : index
    %c0_10 = arith.constant 0 : index
    %13 = vector.load %arg7[%c0_9, %c0_10] : memref<128x128xbf16, #tpu.memory_space<vmem>>, vector<128x128xbf16>
    %cst_11 = arith.constant dense<0.000000e+00> : vector<16x128xf32>
    %14 = tpu.matmul %12, %13, %cst_11 {dimension_numbers = #tpu.dot_dimension_numbers<[1], [0], [0], [1], [0, 0, 1, 1], [], []>} : vector<16x128xbf16>, vector<128x128xbf16>, vector<16x128xf32> -> vector<16x128xf32>
    %15 = arith.addf %11, %14 : vector<16x128xf32>
    %c0_12 = arith.constant 0 : index
    %c0_13 = arith.constant 0 : index
    %16 = vector.load %arg10[%c0_12, %c0_13] : memref<16x128xf32, #tpu.memory_space<vmem>>, vector<16x128xf32>
    tpu.vector_store %arg10[%c0_12, %c0_13], %15 {strides = array<i32>} : memref<16x128xf32, #tpu.memory_space<vmem>>, vector<16x128xf32>,
    %c0_i32_14 = arith.constant 0 : i32
    %17 = arith.cmpi eq, %arg1, %c0_i32_14 : i32
    %18 = arith.extui %17 : i1 to i32
    %c0_i32_15 = arith.constant 0 : i32
    %19 = arith.cmpi ne, %18, %c0_i32_15 : i32
    scf.if %19 {
      %c0_16 = arith.constant 0 : index
      %c0_17 = arith.constant 0 : index
      %20 = vector.load %arg10[%c0_16, %c0_17] : memref<16x128xf32, #tpu.memory_space<vmem>>, vector<16x128xf32>
      %c0_18 = arith.constant 0 : index
      %c0_19 = arith.constant 0 : index
      %21 = vector.load %arg8[%c0_18, %c0_19] : memref<1x128xf32, #tpu.memory_space<vmem>>, vector<1x128xf32>
      %22 = vector.broadcast %21 : vector<1x128xf32> to vector<16x128xf32>
      %23 = arith.addf %20, %22 : vector<16x128xf32>
      %c0_20 = arith.constant 0 : index
      %c0_21 = arith.constant 0 : index
      %24 = vector.load %arg2[%c0_20, %c0_21] : memref<16x128xf32, #tpu.memory_space<vmem>>, vector<16x128xf32>
      %25 = arith.addf %23, %24 : vector<16x128xf32>
      %c0_22 = arith.constant 0 : index
      %c0_23 = arith.constant 0 : index
      %26 = vector.load %arg9[%c0_22, %c0_23] : memref<16x128xf32, #tpu.memory_space<vmem>>, vector<16x128xf32>
      tpu.vector_store %arg9[%c0_22, %c0_23], %25 {strides = array<i32>} : memref<16x128xf32, #tpu.memory_space<vmem>>, vector<16x128xf32>,
    } else {
    }
    return
  }
  func.func @transform_0(%arg0: i32, %arg1: i32) -> (i32, i32) {
    %c0_i32 = arith.constant 0 : i32
    %c0_i32_0 = arith.constant 0 : i32
    return %arg0, %c0_i32 : i32, i32
  }
  func.func @transform_1(%arg0: i32, %arg1: i32) -> (i32, i32) {
    %c0_i32 = arith.constant 0 : i32
    %c0_i32_0 = arith.constant 0 : i32
    %c0_i32_1 = arith.constant 0 : i32
    return %c0_i32, %c0_i32_0 : i32, i32
  }
  func.func @transform_2(%arg0: i32, %arg1: i32) -> (i32, i32) {
    %c0_i32 = arith.constant 0 : i32
    %c0_i32_0 = arith.constant 0 : i32
    %c0_i32_1 = arith.constant 0 : i32
    return %c0_i32, %c0_i32_0 : i32, i32
  }
  func.func @transform_3(%arg0: i32, %arg1: i32) -> (i32, i32) {
    %c0_i32 = arith.constant 0 : i32
    %c0_i32_0 = arith.constant 0 : i32
    return %c0_i32, %arg1 : i32, i32
  }
  func.func @transform_4(%arg0: i32, %arg1: i32) -> (i32, i32) {
    %c0_i32 = arith.constant 0 : i32
    %c0_i32_0 = arith.constant 0 : i32
    return %c0_i32, %arg1 : i32, i32
  }
  func.func @transform_5(%arg0: i32, %arg1: i32) -> (i32, i32) {
    %c0_i32 = arith.constant 0 : i32
    %c0_i32_0 = arith.constant 0 : i32
    return %arg1, %c0_i32 : i32, i32
  }
  func.func @transform_6(%arg0: i32, %arg1: i32) -> (i32, i32) {
    %c0_i32 = arith.constant 0 : i32
    %c0_i32_0 = arith.constant 0 : i32
    %c0_i32_1 = arith.constant 0 : i32
    return %c0_i32, %c0_i32_0 : i32, i32
  }
  func.func @transform_7(%arg0: i32, %arg1: i32) -> (i32, i32) {
    %c0_i32 = arith.constant 0 : i32
    %c0_i32_0 = arith.constant 0 : i32
    return %arg0, %c0_i32 : i32, i32
  }
}

</mosaic_0001>

<llo_original>
// kernel: tpu_custom_call.1
$region0: #{tpu_custom_call.1}
  #allocation0 [shape = 'u32[]', space=smem, size = 0x4, offset = 0x4, fixed_abs, tag = 'smem constant byte address 0x4 - core index']
  #allocation1 [shape = 'u32[144,128]{1,0:T(1,128)}', space=vmem, size = 0x12000, scoped, tag = 'internal scratch']
  #allocation2 [shape = 'f32[16,128]{1,0:T(8,128)}', space=vmem, size = 0x2000, scoped, tag = 'scratch operand']
  #allocation3 [shape = 'bf16[16,128]{1,0:T(16,128)(2,1)}', space=vmem, size = 0x1000, scoped, tag = 'scratch operand']
  %s0 = inlined_call_operand.hbm [shape: f32[16,128], index: 0, kind: input, shape index: {}]
  %s1 = inlined_call_operand.vmem [shape: f32[1,128], index: 1, kind: input, shape index: {}]
  %s2 = inlined_call_operand.vmem [shape: f32[1,128], index: 2, kind: input, shape index: {}]
  %s3 = inlined_call_operand.hbm [shape: bf16[128,128], index: 3, kind: input, shape index: {}]
  %s4 = inlined_call_operand.vmem [shape: f32[1,128], index: 4, kind: input, shape index: {}]
  %s5 = inlined_call_operand.hbm [shape: bf16[128,128], index: 5, kind: input, shape index: {}]
  %s6 = inlined_call_operand.vmem [shape: f32[1,128], index: 6, kind: input, shape index: {}]
  %s7 = inlined_call_operand.hbm [shape: f32[16,128], index: 7, kind: output, shape index: {}]
  %s8 = sld [smem:[#allocation0]]
  $region58: #{tpu_custom_call.1} parent=0
    _
  %s10 = ssub.s32 1, %s8
  %s11 = scalar_select 0, %s10, %s8
  $region1: #{tpu_custom_call.1} parent=0
    #allocation4 [shape = 'u8[8192]{0}', space=vmem, size = 0x2000, scoped, tag = 'input window, operand 0, single buffered']
    #allocation5 [shape = 's32[1]{0}', space=sflag, size = 0x4, scoped, tag = 'scoped memory for tpu_custom_call.1']
    #allocation6 [shape = 's32[1]{0}', space=sflag, size = 0x4, scoped, tag = 'scoped memory for tpu_custom_call.1']
    #allocation7 [shape = 'u8[32768]{0}', space=vmem, size = 0x8000, scoped, tag = 'input window, operand 3, single buffered']
    #allocation8 [shape = 's32[1]{0}', space=sflag, size = 0x4, scoped, tag = 'scoped memory for tpu_custom_call.1']
    #allocation9 [shape = 'u8[32768]{0}', space=vmem, size = 0x8000, scoped, tag = 'input window, operand 5, single buffered']
    #allocation10 [shape = 'u8[8192]{0}', space=vmem, size = 0x2000, scoped, tag = 'output window, operand 0, single buffered']
    %12 = vsyncpa [#allocation5], 0
    %13 = vsyncpa [#allocation8], 0
    %14 = vsyncpa [#allocation6], 0
    // Predicated region
    $region2: #{tpu_custom_call.1} parent=1 // pred_check
      _
    $region3: #{tpu_custom_call.1} parent=1 // pred_check_branch
      %16 = sbr.rel (0) target = $region5
    $region4: #{tpu_custom_call.1} parent=1 // pred_region
      %s18 = ssub.s32 256, 256
      %19 = vsyncadd [#allocation5], %s18
      %s20 = sshll.u32 [#allocation4], 4
      %s21 = int_to_ptr.vmem [resolvable:$true] %s20
      %26 = dma.hbm_to_vmem [thread:$0]  %s0, 256, %s21, [#allocation5], 128, 128, 8
    $region5: #{tpu_custom_call.1} parent=1 // pred_fallthru
      _
    // Predicated region
    $region6: #{tpu_custom_call.1} parent=1 // pred_check
      _
    $region7: #{tpu_custom_call.1} parent=1 // pred_check_branch
      %28 = sbr.rel (0) target = $region9
    $region8: #{tpu_custom_call.1} parent=1 // pred_region
      _
    $region9: #{tpu_custom_call.1} parent=1 // pred_fallthru
      _
    // Predicated region
    $region10: #{tpu_custom_call.1} parent=1 // pred_check
      _
    $region11: #{tpu_custom_call.1} parent=1 // pred_check_branch
      %30 = sbr.rel (0) target = $region13
    $region12: #{tpu_custom_call.1} parent=1 // pred_region
      _
    $region13: #{tpu_custom_call.1} parent=1 // pred_fallthru
      _
    // Predicated region
    $region14: #{tpu_custom_call.1} parent=1 // pred_check
      _
    $region15: #{tpu_custom_call.1} parent=1 // pred_check_branch
      %32 = sbr.rel (0) target = $region17
    $region16: #{tpu_custom_call.1} parent=1 // pred_region
      %s34 = ssub.s32 1024, 1024
      %35 = vsyncadd [#allocation8], %s34
      %s36 = sshll.u32 [#allocation7], 4
      %s37 = int_to_ptr.vmem [resolvable:$true] %s36
      %42 = dma.hbm_to_vmem [thread:$0]  %s3, 1024, %s37, [#allocation8], 64, 64, 4
    $region17: #{tpu_custom_call.1} parent=1 // pred_fallthru
      _
    // Predicated region
    $region18: #{tpu_custom_call.1} parent=1 // pred_check
      _
    $region19: #{tpu_custom_call.1} parent=1 // pred_check_branch
      %44 = sbr.rel (0) target = $region21
    $region20: #{tpu_custom_call.1} parent=1 // pred_region
      _
    $region21: #{tpu_custom_call.1} parent=1 // pred_fallthru
      _
    // Predicated region
    $region22: #{tpu_custom_call.1} parent=1 // pred_check
      _
    $region23: #{tpu_custom_call.1} parent=1 // pred_check_branch
      %46 = sbr.rel (0) target = $region25
    $region24: #{tpu_custom_call.1} parent=1 // pred_region
      %s48 = ssub.s32 1024, 1024
      %49 = vsyncadd [#allocation8], %s48
      %s50 = sshll.u32 [#allocation9], 4
      %s51 = int_to_ptr.vmem [resolvable:$true] %s50
      %56 = dma.hbm_to_vmem [thread:$0]  %s5, 1024, %s51, [#allocation8], 64, 64, 4
    $region25: #{tpu_custom_call.1} parent=1 // pred_fallthru
      _
    // Predicated region
    $region26: #{tpu_custom_call.1} parent=1 // pred_check
      _
    $region27: #{tpu_custom_call.1} parent=1 // pred_check_branch
      %58 = sbr.rel (0) target = $region29
    $region28: #{tpu_custom_call.1} parent=1 // pred_region
      _
    $region29: #{tpu_custom_call.1} parent=1 // pred_fallthru
      _
    // Predicated region
    $region30: #{tpu_custom_call.1} parent=1 // pred_check
      _
    $region31: #{tpu_custom_call.1} parent=1 // pred_check_branch
      %60 = sbr.rel (0) target = $region33
    $region32: #{tpu_custom_call.1} parent=1 // pred_region
      %61 = dma.done [#allocation5], 256
    $region33: #{tpu_custom_call.1} parent=1 // pred_fallthru
      _
    // Predicated region
    $region34: #{tpu_custom_call.1} parent=1 // pred_check
      _
    $region35: #{tpu_custom_call.1} parent=1 // pred_check_branch
      %63 = sbr.rel (0) target = $region37
    $region36: #{tpu_custom_call.1} parent=1 // pred_region
      %64 = dma.done [#allocation8], 1024
    $region37: #{tpu_custom_call.1} parent=1 // pred_fallthru
      _
    // Predicated region
    $region38: #{tpu_custom_call.1} parent=1 // pred_check
      _
    $region39: #{tpu_custom_call.1} parent=1 // pred_check_branch
      %66 = sbr.rel (0) target = $region41
    $region40: #{tpu_custom_call.1} parent=1 // pred_region
      %67 = dma.done [#allocation8], 1024
    $region41: #{tpu_custom_call.1} parent=1 // pred_fallthru
      _
    %p69 = scmp.eq.s32.totalorder 0, 0
    // Predicated region
    $region42: #{tpu_custom_call.1} parent=1 // pred_check
      %p70 = pneg %p69
    $region43: #{tpu_custom_call.1} parent=1 // pred_check_branch
      %72 = sbr.rel (%p70) target = $region45
    $region44: #{tpu_custom_call.1} parent=1 // pred_region
      %v73 = vld [vmem:[#allocation4] sm:$0xff]
      %v74 = vld [vmem:[#allocation4 + $0x8] sm:$0xff]
      %75 = vadd.xlane.f32.xlu0 %v73
      %v76 = vpop.xlane.xlu0 %75
      %77 = vadd.xlane.f32.xlu0 %v74
      %v78 = vpop.xlane.xlu0 %77
      %v79 = vmul.f32 %v76, 0.03125
      %v80 = vmul.f32 %v78, 0.03125
      %v81 = vsub.f32 %v73, %v79
      %v82 = vsub.f32 %v74, %v80
      %v83 = vlaneseq
      %v84 = vand.u32 %v83, 127
      %vm85 = vcmp.lt.s32.totalorder %v84, 32
      %v86 = vsel %vm85, %v81, 0.0
      %v87 = vsel %vm85, %v82, 0.0
      %v88 = vmul.f32 %v86, %v86
      %v89 = vmul.f32 %v87, %v87
      %90 = vadd.xlane.f32.xlu0 %v88
      %v91 = vpop.xlane.xlu0 %90
      %92 = vadd.xlane.f32.xlu0 %v89
      %v93 = vpop.xlane.xlu0 %92
      %v94 = vmul.f32 %v91, 0.03125
      %v95 = vmul.f32 %v93, 0.03125
      %v96 = vadd.f32 %v94, 1e-05
      %v97 = vadd.f32 %v95, 1e-05
      %v98 = vrsqrt.pop %v96
      %v99 = vrsqrt.pop %v97
      %v100 = vmul.f32 %v81, %v98
      %v101 = vmul.f32 %v82, %v99
      %v102 = vld [vmem:[%s1] sm:$0x1]
      %v104 = vlaneseq
      %v105 = vshrl.u32 %v104, 7
      %v106 = vsub.s32 0, %v105
      %v107 = vrot.slane %v102, %v106
      %v109 = vmul.f32 %v100, %v107
      %v110 = vmul.f32 %v101, %v107
      %v111 = vld [vmem:[%s2] sm:$0x1]
      %v113 = vlaneseq
      %v114 = vshrl.u32 %v113, 7
      %v115 = vsub.s32 0, %v114
      %v116 = vrot.slane %v111, %v115
      %v118 = vadd.f32 %v109, %v116
      %v119 = vadd.f32 %v110, %v116
      %v120 = vpack.c.bf16 %v119, %v118
      %121 = vst [vmem:[#allocation3] sm:$0xff] %v120
      %122 = vst [vmem:[#allocation2] sm:$0xff] 0.0
      %123 = vst [vmem:[#allocation2 + $0x8] sm:$0xff] 0.0
    $region45: #{tpu_custom_call.1} parent=1 // pred_fallthru
      _
    %v124 = vld [vmem:[#allocation3] sm:$0xff]
    %v125 = vld [vmem:[#allocation7] sm:$0xf]
    %v126 = vld [vmem:[#allocation7 + $0x4] sm:$0xf]
    %v127 = vld [vmem:[#allocation7 + $0x8] sm:$0xf]
    %v128 = vld [vmem:[#allocation7 + $0xc] sm:$0xf]
    %v129 = vld [vmem:[#allocation7 + $0x10] sm:$0xf]
    %v130 = vld [vmem:[#allocation7 + $0x14] sm:$0xf]
    %v131 = vld [vmem:[#allocation7 + $0x18] sm:$0xf]
    %v132 = vld [vmem:[#allocation7 + $0x1c] sm:$0xf]
    %v133 = vld [vmem:[#allocation7 + $0x20] sm:$0xf]
    %v134 = vld [vmem:[#allocation7 + $0x24] sm:$0xf]
    %v135 = vld [vmem:[#allocation7 + $0x28] sm:$0xf]
    %v136 = vld [vmem:[#allocation7 + $0x2c] sm:$0xf]
    %v137 = vld [vmem:[#allocation7 + $0x30] sm:$0xf]
    %v138 = vld [vmem:[#allocation7 + $0x34] sm:$0xf]
    %v139 = vld [vmem:[#allocation7 + $0x38] sm:$0xf]
    %v140 = vld [vmem:[#allocation7 + $0x3c] sm:$0xf]
    %v141 = vld [vmem:[%s4] sm:$0x1]
    %v143 = vlaneseq
    %v144 = vshrl.u32 %v143, 7
    %v145 = vsub.s32 0, %v144
    %v146 = vrot.slane %v141, %v145
    %v164 = vunpack.c.l.b16 %v125
    %v165 = vunpack.c.l.b16 %v126
    %v166 = vunpack.c.l.b16 %v127
    %v167 = vunpack.c.l.b16 %v128
    %v168 = vunpack.c.l.b16 %v129
    %v169 = vunpack.c.l.b16 %v130
    %v170 = vunpack.c.l.b16 %v131
    %v171 = vunpack.c.l.b16 %v132
    %v172 = vunpack.c.l.b16 %v133
    %v173 = vunpack.c.l.b16 %v134
    %v174 = vunpack.c.l.b16 %v135
    %v175 = vunpack.c.l.b16 %v136
    %v176 = vunpack.c.l.b16 %v137
    %v177 = vunpack.c.l.b16 %v138
    %v178 = vunpack.c.l.b16 %v139
    %v179 = vunpack.c.l.b16 %v140
    %v180 = vpack.c.b16 %v165, %v164
    %v181 = vpack.c.b16 %v167, %v166
    %v182 = vpack.c.b16 %v169, %v168
    %v183 = vpack.c.b16 %v171, %v170
    %v184 = vpack.c.b16 %v173, %v172
    %v185 = vpack.c.b16 %v175, %v174
    %v186 = vpack.c.b16 %v177, %v176
    %v187 = vpack.c.b16 %v179, %v178
    %196 = vmatprep.subr.bf16.mxu0 0
    %197 = vmatpush1.bf16.msra.mxu0 %v180
    %198 = vmatprep.subr.bf16.mxu0 0
    %199 = vmatpush1.bf16.msra.mxu0 %v181
    %200 = vmatprep.subr.bf16.mxu0 0
    %201 = vmatpush1.bf16.msra.mxu0 %v182
    %202 = vmatprep.subr.bf16.mxu0 0
    %203 = vmatpush1.bf16.msra.mxu0 %v183
    %204 = vmatprep.subr.bf16.mxu0 0
    %205 = vmatpush1.bf16.msra.mxu0 %v184
    %206 = vmatprep.subr.bf16.mxu0 0
    %207 = vmatpush1.bf16.msra.mxu0 %v185
    %208 = vmatprep.subr.bf16.mxu0 0
    %209 = vmatpush1.bf16.msra.mxu0 %v186
    %210 = vmatprep.subr.bf16.mxu0 0
    %211 = vmatpush1.bf16.msra.mxu0 %v187
    %212 = vmatprep.subr.bf16.mxu0 0
    %213 = vmatpush1.bf16.msra.mxu0 0
    %214 = vmatprep.subr.bf16.mxu0 0
    %215 = vmatpush1.bf16.msra.mxu0 0
    %216 = vmatprep.subr.bf16.mxu0 0
    %217 = vmatpush1.bf16.msra.mxu0 0
    %218 = vmatprep.subr.bf16.mxu0 0
    %219 = vmatpush1.bf16.msra.mxu0 0
    %220 = vmatprep.subr.bf16.mxu0 0
    %221 = vmatpush1.bf16.msra.mxu0 0
    %222 = vmatprep.subr.bf16.mxu0 0
    %223 = vmatpush1.bf16.msra.mxu0 0
    %224 = vmatprep.subr.bf16.mxu0 0
    %225 = vmatpush1.bf16.msra.mxu0 0
    %226 = vmatprep.subr.bf16.mxu0 0
    %227 = vmatpush1.bf16.msra.mxu0 0
    %228 = vmatprep.mubr.bf16.mxu0 0
    %229 = vmatmul.mubr.bf16.gmra.mrb[0].mxu0 %v124
    %v230 = vpop.f32.mrb[0].mxu0
    %v231 = vadd.f32 %v146, %v230
    %v232 = vpop.f32.mrb[0].mxu0
    %v233 = vpop.f32.mrb[0].mxu0
    %v234 = vadd.f32 %v146, %v233
    %v235 = vpop.f32.mrb[0].mxu0
    %236 = vdwg.mxu0
    %v237 = vmax.f32 %v231, 0.0
    %v238 = vmax.f32 %v234, 0.0
    %v239 = vld [vmem:[#allocation2] sm:$0xff]
    %v240 = vld [vmem:[#allocation2 + $0x8] sm:$0xff]
    %v241 = vpack.c.bf16 %v238, %v237
    %v242 = vld [vmem:[#allocation9] sm:$0xf]
    %v243 = vld [vmem:[#allocation9 + $0x4] sm:$0xf]
    %v244 = vld [vmem:[#allocation9 + $0x8] sm:$0xf]
    %v245 = vld [vmem:[#allocation9 + $0xc] sm:$0xf]
    %v246 = vld [vmem:[#allocation9 + $0x10] sm:$0xf]
    %v247 = vld [vmem:[#allocation9 + $0x14] sm:$0xf]
    %v248 = vld [vmem:[#allocation9 + $0x18] sm:$0xf]
    %v249 = vld [vmem:[#allocation9 + $0x1c] sm:$0xf]
    %v250 = vld [vmem:[#allocation9 + $0x20] sm:$0xf]
    %v251 = vld [vmem:[#allocation9 + $0x24] sm:$0xf]
    %v252 = vld [vmem:[#allocation9 + $0x28] sm:$0xf]
    %v253 = vld [vmem:[#allocation9 + $0x2c] sm:$0xf]
    %v254 = vld [vmem:[#allocation9 + $0x30] sm:$0xf]
    %v255 = vld [vmem:[#allocation9 + $0x34] sm:$0xf]
    %v256 = vld [vmem:[#allocation9 + $0x38] sm:$0xf]
    %v257 = vld [vmem:[#allocation9 + $0x3c] sm:$0xf]
    %v274 = vunpack.c.l.b16 %v242
    %v275 = vunpack.c.l.b16 %v243
    %v276 = vunpack.c.l.b16 %v244
    %v277 = vunpack.c.l.b16 %v245
    %v278 = vunpack.c.l.b16 %v246
    %v279 = vunpack.c.l.b16 %v247
    %v280 = vunpack.c.l.b16 %v248
    %v281 = vunpack.c.l.b16 %v249
    %v282 = vunpack.c.l.b16 %v250
    %v283 = vunpack.c.l.b16 %v251
    %v284 = vunpack.c.l.b16 %v252
    %v285 = vunpack.c.l.b16 %v253
    %v286 = vunpack.c.l.b16 %v254
    %v287 = vunpack.c.l.b16 %v255
    %v288 = vunpack.c.l.b16 %v256
    %v289 = vunpack.c.l.b16 %v257
    %v290 = vpack.c.b16 %v275, %v274
    %v291 = vpack.c.b16 %v277, %v276
    %v292 = vpack.c.b16 %v279, %v278
    %v293 = vpack.c.b16 %v281, %v280
    %v294 = vpack.c.b16 %v283, %v282
    %v295 = vpack.c.b16 %v285, %v284
    %v296 = vpack.c.b16 %v287, %v286
    %v297 = vpack.c.b16 %v289, %v288
    %306 = vmatprep.subr.bf16.mxu0 0
    %307 = vmatpush1.bf16.msra.mxu0 %v290
    %308 = vmatprep.subr.bf16.mxu0 0
    %309 = vmatpush1.bf16.msra.mxu0 %v291
    %310 = vmatprep.subr.bf16.mxu0 0
    %311 = vmatpush1.bf16.msra.mxu0 %v292
    %312 = vmatprep.subr.bf16.mxu0 0
    %313 = vmatpush1.bf16.msra.mxu0 %v293
    %314 = vmatprep.subr.bf16.mxu0 0
    %315 = vmatpush1.bf16.msra.mxu0 %v294
    %316 = vmatprep.subr.bf16.mxu0 0
    %317 = vmatpush1.bf16.msra.mxu0 %v295
    %318 = vmatprep.subr.bf16.mxu0 0
    %319 = vmatpush1.bf16.msra.mxu0 %v296
    %320 = vmatprep.subr.bf16.mxu0 0
    %321 = vmatpush1.bf16.msra.mxu0 %v297
    %322 = vmatprep.subr.bf16.mxu0 0
    %323 = vmatpush1.bf16.msra.mxu0 0
    %324 = vmatprep.subr.bf16.mxu0 0
    %325 = vmatpush1.bf16.msra.mxu0 0
    %326 = vmatprep.subr.bf16.mxu0 0
    %327 = vmatpush1.bf16.msra.mxu0 0
    %328 = vmatprep.subr.bf16.mxu0 0
    %329 = vmatpush1.bf16.msra.mxu0 0
    %330 = vmatprep.subr.bf16.mxu0 0
    %331 = vmatpush1.bf16.msra.mxu0 0
    %332 = vmatprep.subr.bf16.mxu0 0
    %333 = vmatpush1.bf16.msra.mxu0 0
    %334 = vmatprep.subr.bf16.mxu0 0
    %335 = vmatpush1.bf16.msra.mxu0 0
    %336 = vmatprep.subr.bf16.mxu0 0
    %337 = vmatpush1.bf16.msra.mxu0 0
    %338 = vmatprep.mubr.bf16.mxu0 0
    %339 = vmatmul.mubr.bf16.gmra.mrb[0].mxu0 %v241
    %v340 = vpop.f32.mrb[0].mxu0
    %v341 = vadd.f32 0.0, %v340
    %v342 = vpop.f32.mrb[0].mxu0
    %v343 = vpop.f32.mrb[0].mxu0
    %v344 = vadd.f32 0.0, %v343
    %v345 = vpop.f32.mrb[0].mxu0
    %346 = vdwg.mxu0
    %v347 = vadd.f32 %v239, %v341
    %v348 = vadd.f32 %v240, %v344
    %349 = vst [vmem:[#allocation2] sm:$0xff] %v347
    %350 = vst [vmem:[#allocation2 + $0x8] sm:$0xff] %v348
    // Predicated region
    $region46: #{tpu_custom_call.1} parent=1 // pred_check
      %p351 = pneg %p69
    $region47: #{tpu_custom_call.1} parent=1 // pred_check_branch
      %353 = sbr.rel (%p351) target = $region49
    $region48: #{tpu_custom_call.1} parent=1 // pred_region
      %v354 = vld [vmem:[#allocation2] sm:$0xff]
      %v355 = vld [vmem:[#allocation2 + $0x8] sm:$0xff]
      %v356 = vld [vmem:[%s6] sm:$0x1]
      %v358 = vlaneseq
      %v359 = vshrl.u32 %v358, 7
      %v360 = vsub.s32 0, %v359
      %v361 = vrot.slane %v356, %v360
      %v363 = vadd.f32 %v354, %v361
      %v364 = vadd.f32 %v355, %v361
      %v365 = vld [vmem:[#allocation4] sm:$0xff]
      %v366 = vld [vmem:[#allocation4 + $0x8] sm:$0xff]
      %v367 = vadd.f32 %v363, %v365
      %v368 = vadd.f32 %v364, %v366
      %369 = vst [vmem:[#allocation10] sm:$0xff] %v367
      %370 = vst [vmem:[#allocation10 + $0x8] sm:$0xff] %v368
    $region49: #{tpu_custom_call.1} parent=1 // pred_fallthru
      _
    // Predicated region
    $region50: #{tpu_custom_call.1} parent=1 // pred_check
      _
    $region51: #{tpu_custom_call.1} parent=1 // pred_check_branch
      %372 = sbr.rel (0) target = $region53
    $region52: #{tpu_custom_call.1} parent=1 // pred_region
      %s374 = ssub.s32 256, 256
      %375 = vsyncadd [#allocation6], %s374
      %s376 = sshll.u32 [#allocation10], 4
      %s377 = int_to_ptr.vmem [resolvable:$true] %s376
      %382 = dma.vmem_to_hbm [thread:$0]  %s377, 256, %s7, [#allocation6], 128, 128, 8
    $region53: #{tpu_custom_call.1} parent=1 // pred_fallthru
      _
    // Predicated region
    $region54: #{tpu_custom_call.1} parent=1 // pred_check
      _
    $region55: #{tpu_custom_call.1} parent=1 // pred_check_branch
      %384 = sbr.rel (0) target = $region57
    $region56: #{tpu_custom_call.1} parent=1 // pred_region
      %385 = dma.done [#allocation6], 256
    $region57: #{tpu_custom_call.1} parent=1 // pred_fallthru
      _
    %386 = vsyncpa [#allocation5], 1
    %387 = vsyncpa [#allocation8], 1
    %388 = vsyncpa [#allocation6], 1

// kernel: tpu_custom_call.1
$region0: #{tpu_custom_call.1}
  #allocation0 [shape = 'u32[]', space=smem, size = 0x4, offset = 0x4, fixed_abs, tag = 'smem constant byte address 0x4 - core index']
  #allocation1 [shape = 'u32[144,128]{1,0:T(1,128)}', space=vmem, size = 0x12000, scoped, tag = 'internal scratch']
  #allocation2 [shape = 'f32[16,128]{1,0:T(8,128)}', space=vmem, size = 0x2000, scoped, tag = 'scratch operand']
  #allocation3 [shape = 'bf16[16,128]{1,0:T(16,128)(2,1)}', space=vmem, size = 0x1000, scoped, tag = 'scratch operand']
  %s0 = inlined_call_operand.hbm [shape: f32[16,128], index: 0, kind: input, shape index: {}]
  %s1 = inlined_call_operand.vmem [shape: f32[1,128], index: 1, kind: input, shape index: {}]
  %s2 = inlined_call_operand.vmem [shape: f32[1,128], index: 2, kind: input, shape index: {}]
  %s3 = inlined_call_operand.hbm [shape: bf16[128,128], index: 3, kind: input, shape index: {}]
  %s4 = inlined_call_operand.vmem [shape: f32[1,128], index: 4, kind: input, shape index: {}]
  %s5 = inlined_call_operand.hbm [shape: bf16[128,128], index: 5, kind: input, shape index: {}]
  %s6 = inlined_call_operand.vmem [shape: f32[1,128], index: 6, kind: input, shape index: {}]
  %s7 = inlined_call_operand.hbm [shape: f32[16,128], index: 7, kind: output, shape index: {}]
  %s8 = sld [smem:[#allocation0]]
  $region58: #{tpu_custom_call.1} parent=0
    _
  %s10 = ssub.s32 1, %s8
  %s11 = scalar_select 0, %s10, %s8
  $region1: #{tpu_custom_call.1} parent=0
    #allocation4 [shape = 'u8[8192]{0}', space=vmem, size = 0x2000, scoped, tag = 'input window, operand 0, single buffered']
    #allocation5 [shape = 's32[1]{0}', space=sflag, size = 0x4, scoped, tag = 'scoped memory for tpu_custom_call.1']
    #allocation6 [shape = 's32[1]{0}', space=sflag, size = 0x4, scoped, tag = 'scoped memory for tpu_custom_call.1']
    #allocation7 [shape = 'u8[32768]{0}', space=vmem, size = 0x8000, scoped, tag = 'input window, operand 3, single buffered']
    #allocation8 [shape = 's32[1]{0}', space=sflag, size = 0x4, scoped, tag = 'scoped memory for tpu_custom_call.1']
    #allocation9 [shape = 'u8[32768]{0}', space=vmem, size = 0x8000, scoped, tag = 'input window, operand 5, single buffered']
    #allocation10 [shape = 'u8[8192]{0}', space=vmem, size = 0x2000, scoped, tag = 'output window, operand 0, single buffered']
    %12 = vsyncpa [#allocation5], 0
    %13 = vsyncpa [#allocation8], 0
    %14 = vsyncpa [#allocation6], 0
    // Predicated region
    $region2: #{tpu_custom_call.1} parent=1 // pred_check
      _
    $region3: #{tpu_custom_call.1} parent=1 // pred_check_branch
      %16 = sbr.rel (0) target = $region5
    $region4: #{tpu_custom_call.1} parent=1 // pred_region
      %s18 = ssub.s32 256, 256
      %19 = vsyncadd [#allocation5], %s18
      %s20 = sshll.u32 [#allocation4], 4
      %s21 = int_to_ptr.vmem [resolvable:$true] %s20
      %26 = dma.hbm_to_vmem [thread:$0]  %s0, 256, %s21, [#allocation5], 128, 128, 8
    $region5: #{tpu_custom_call.1} parent=1 // pred_fallthru
      _
    // Predicated region
    $region6: #{tpu_custom_call.1} parent=1 // pred_check
      _
    $region7: #{tpu_custom_call.1} parent=1 // pred_check_branch
      %28 = sbr.rel (0) target = $region9
    $region8: #{tpu_custom_call.1} parent=1 // pred_region
      _
    $region9: #{tpu_custom_call.1} parent=1 // pred_fallthru
      _
    // Predicated region
    $region10: #{tpu_custom_call.1} parent=1 // pred_check
      _
    $region11: #{tpu_custom_call.1} parent=1 // pred_check_branch
      %30 = sbr.rel (0) target = $region13
    $region12: #{tpu_custom_call.1} parent=1 // pred_region
      _
    $region13: #{tpu_custom_call.1} parent=1 // pred_fallthru
      _
    // Predicated region
    $region14: #{tpu_custom_call.1} parent=1 // pred_check
      _
    $region15: #{tpu_custom_call.1} parent=1 // pred_check_branch
      %32 = sbr.rel (0) target = $region17
    $region16: #{tpu_custom_call.1} parent=1 // pred_region
      %s34 = ssub.s32 1024, 1024
      %35 = vsyncadd [#allocation8], %s34
      %s36 = sshll.u32 [#allocation7], 4
      %s37 = int_to_ptr.vmem [resolvable:$true] %s36
      %42 = dma.hbm_to_vmem [thread:$0]  %s3, 1024, %s37, [#allocation8], 64, 64, 4
    $region17: #{tpu_custom_call.1} parent=1 // pred_fallthru
      _
    // Predicated region
    $region18: #{tpu_custom_call.1} parent=1 // pred_check
      _
    $region19: #{tpu_custom_call.1} parent=1 // pred_check_branch
      %44 = sbr.rel (0) target = $region21
    $region20: #{tpu_custom_call.1} parent=1 // pred_region
      _
    $region21: #{tpu_custom_call.1} parent=1 // pred_fallthru
      _
    // Predicated region
    $region22: #{tpu_custom_call.1} parent=1 // pred_check
      _
    $region23: #{tpu_custom_call.1} parent=1 // pred_check_branch
      %46 = sbr.rel (0) target = $region25
    $region24: #{tpu_custom_call.1} parent=1 // pred_region
      %s48 = ssub.s32 1024, 1024
      %49 = vsyncadd [#allocation8], %s48
      %s50 = sshll.u32 [#allocation9], 4
      %s51 = int_to_ptr.vmem [resolvable:$true] %s50
      %56 = dma.hbm_to_vmem [thread:$0]  %s5, 1024, %s51, [#allocation8], 64, 64, 4
    $region25: #{tpu_custom_call.1} parent=1 // pred_fallthru
      _
    // Predicated region
    $region26: #{tpu_custom_call.1} parent=1 // pred_check
      _
    $region27: #{tpu_custom_call.1} parent=1 // pred_check_branch
      %58 = sbr.rel (0) target = $region29
    $region28: #{tpu_custom_call.1} parent=1 // pred_region
      _
    $region29: #{tpu_custom_call.1} parent=1 // pred_fallthru
      _
    // Predicated region
    $region30: #{tpu_custom_call.1} parent=1 // pred_check
      _
    $region31: #{tpu_custom_call.1} parent=1 // pred_check_branch
      %60 = sbr.rel (0) target = $region33
    $region32: #{tpu_custom_call.1} parent=1 // pred_region
      %61 = dma.done [#allocation5], 256
    $region33: #{tpu_custom_call.1} parent=1 // pred_fallthru
      _
    // Predicated region
    $region34: #{tpu_custom_call.1} parent=1 // pred_check
      _
    $region35: #{tpu_custom_call.1} parent=1 // pred_check_branch
      %63 = sbr.rel (0) target = $region37
    $region36: #{tpu_custom_call.1} parent=1 // pred_region
      %64 = dma.done [#allocation8], 1024
    $region37: #{tpu_custom_call.1} parent=1 // pred_fallthru
      _
    // Predicated region
    $region38: #{tpu_custom_call.1} parent=1 // pred_check
      _
    $region39: #{tpu_custom_call.1} parent=1 // pred_check_branch
      %66 = sbr.rel (0) target = $region41
    $region40: #{tpu_custom_call.1} parent=1 // pred_region
      %67 = dma.done [#allocation8], 1024
    $region41: #{tpu_custom_call.1} parent=1 // pred_fallthru
      _
    %p69 = scmp.eq.s32.totalorder 0, 0
    // Predicated region
    $region42: #{tpu_custom_call.1} parent=1 // pred_check
      %p70 = pneg %p69
    $region43: #{tpu_custom_call.1} parent=1 // pred_check_branch
      %72 = sbr.rel (%p70) target = $region45
    $region44: #{tpu_custom_call.1} parent=1 // pred_region
      %v73 = vld [vmem:[#allocation4] sm:$0xff]
      %v74 = vld [vmem:[#allocation4 + $0x8] sm:$0xff]
      %75 = vadd.xlane.f32.xlu0 %v73
      %v76 = vpop.xlane.xlu0 %75
      %77 = vadd.xlane.f32.xlu0 %v74
      %v78 = vpop.xlane.xlu0 %77
      %v79 = vmul.f32 %v76, 0.03125
      %v80 = vmul.f32 %v78, 0.03125
      %v81 = vsub.f32 %v73, %v79
      %v82 = vsub.f32 %v74, %v80
      %v83 = vlaneseq
      %v84 = vand.u32 %v83, 127
      %vm85 = vcmp.lt.s32.totalorder %v84, 32
      %v86 = vsel %vm85, %v81, 0.0
      %v87 = vsel %vm85, %v82, 0.0
      %v88 = vmul.f32 %v86, %v86
      %v89 = vmul.f32 %v87, %v87
      %90 = vadd.xlane.f32.xlu0 %v88
      %v91 = vpop.xlane.xlu0 %90
      %92 = vadd.xlane.f32.xlu0 %v89
      %v93 = vpop.xlane.xlu0 %92
      %v94 = vmul.f32 %v91, 0.03125
      %v95 = vmul.f32 %v93, 0.03125
      %v96 = vadd.f32 %v94, 1e-05
      %v97 = vadd.f32 %v95, 1e-05
      %v98 = vrsqrt.pop %v96
      %v99 = vrsqrt.pop %v97
      %v100 = vmul.f32 %v81, %v98
      %v101 = vmul.f32 %v82, %v99
      %v102 = vld [vmem:[%s1] sm:$0x1]
      %v104 = vlaneseq
      %v105 = vshrl.u32 %v104, 7
      %v106 = vsub.s32 0, %v105
      %v107 = vrot.slane %v102, %v106
      %v109 = vmul.f32 %v100, %v107
      %v110 = vmul.f32 %v101, %v107
      %v111 = vld [vmem:[%s2] sm:$0x1]
      %v113 = vlaneseq
      %v114 = vshrl.u32 %v113, 7
      %v115 = vsub.s32 0, %v114
      %v116 = vrot.slane %v111, %v115
      %v118 = vadd.f32 %v109, %v116
      %v119 = vadd.f32 %v110, %v116
      %v120 = vpack.c.bf16 %v119, %v118
      %121 = vst [vmem:[#allocation3] sm:$0xff] %v120
      %122 = vst [vmem:[#allocation2] sm:$0xff] 0.0
      %123 = vst [vmem:[#allocation2 + $0x8] sm:$0xff] 0.0
    $region45: #{tpu_custom_call.1} parent=1 // pred_fallthru
      _
    %v124 = vld [vmem:[#allocation3] sm:$0xff]
    %v125 = vld [vmem:[#allocation7] sm:$0xf]
    %v126 = vld [vmem:[#allocation7 + $0x4] sm:$0xf]
    %v127 = vld [vmem:[#allocation7 + $0x8] sm:$0xf]
    %v128 = vld [vmem:[#allocation7 + $0xc] sm:$0xf]
    %v129 = vld [vmem:[#allocation7 + $0x10] sm:$0xf]
    %v130 = vld [vmem:[#allocation7 + $0x14] sm:$0xf]
    %v131 = vld [vmem:[#allocation7 + $0x18] sm:$0xf]
    %v132 = vld [vmem:[#allocation7 + $0x1c] sm:$0xf]
    %v133 = vld [vmem:[#allocation7 + $0x20] sm:$0xf]
    %v134 = vld [vmem:[#allocation7 + $0x24] sm:$0xf]
    %v135 = vld [vmem:[#allocation7 + $0x28] sm:$0xf]
    %v136 = vld [vmem:[#allocation7 + $0x2c] sm:$0xf]
    %v137 = vld [vmem:[#allocation7 + $0x30] sm:$0xf]
    %v138 = vld [vmem:[#allocation7 + $0x34] sm:$0xf]
    %v139 = vld [vmem:[#allocation7 + $0x38] sm:$0xf]
    %v140 = vld [vmem:[#allocation7 + $0x3c] sm:$0xf]
    %v141 = vld [vmem:[%s4] sm:$0x1]
    %v143 = vlaneseq
    %v144 = vshrl.u32 %v143, 7
    %v145 = vsub.s32 0, %v144
    %v146 = vrot.slane %v141, %v145
    %v164 = vunpack.c.l.b16 %v125
    %v165 = vunpack.c.l.b16 %v126
    %v166 = vunpack.c.l.b16 %v127
    %v167 = vunpack.c.l.b16 %v128
    %v168 = vunpack.c.l.b16 %v129
    %v169 = vunpack.c.l.b16 %v130
    %v170 = vunpack.c.l.b16 %v131
    %v171 = vunpack.c.l.b16 %v132
    %v172 = vunpack.c.l.b16 %v133
    %v173 = vunpack.c.l.b16 %v134
    %v174 = vunpack.c.l.b16 %v135
    %v175 = vunpack.c.l.b16 %v136
    %v176 = vunpack.c.l.b16 %v137
    %v177 = vunpack.c.l.b16 %v138
    %v178 = vunpack.c.l.b16 %v139
    %v179 = vunpack.c.l.b16 %v140
    %v180 = vpack.c.b16 %v165, %v164
    %v181 = vpack.c.b16 %v167, %v166
    %v182 = vpack.c.b16 %v169, %v168
    %v183 = vpack.c.b16 %v171, %v170
    %v184 = vpack.c.b16 %v173, %v172
    %v185 = vpack.c.b16 %v175, %v174
    %v186 = vpack.c.b16 %v177, %v176
    %v187 = vpack.c.b16 %v179, %v178
    %196 = vmatprep.subr.bf16.mxu0 0
    %197 = vmatpush1.bf16.msra.mxu0 %v180
    %198 = vmatprep.subr.bf16.mxu0 0
    %199 = vmatpush1.bf16.msra.mxu0 %v181
    %200 = vmatprep.subr.bf16.mxu0 0
    %201 = vmatpush1.bf16.msra.mxu0 %v182
    %202 = vmatprep.subr.bf16.mxu0 0
    %203 = vmatpush1.bf16.msra.mxu0 %v183
    %204 = vmatprep.subr.bf16.mxu0 0
    %205 = vmatpush1.bf16.msra.mxu0 %v184
    %206 = vmatprep.subr.bf16.mxu0 0
    %207 = vmatpush1.bf16.msra.mxu0 %v185
    %208 = vmatprep.subr.bf16.mxu0 0
    %209 = vmatpush1.bf16.msra.mxu0 %v186
    %210 = vmatprep.subr.bf16.mxu0 0
    %211 = vmatpush1.bf16.msra.mxu0 %v187
    %212 = vmatprep.subr.bf16.mxu0 0
    %213 = vmatpush1.bf16.msra.mxu0 0
    %214 = vmatprep.subr.bf16.mxu0 0
    %215 = vmatpush1.bf16.msra.mxu0 0
    %216 = vmatprep.subr.bf16.mxu0 0
    %217 = vmatpush1.bf16.msra.mxu0 0
    %218 = vmatprep.subr.bf16.mxu0 0
    %219 = vmatpush1.bf16.msra.mxu0 0
    %220 = vmatprep.subr.bf16.mxu0 0
    %221 = vmatpush1.bf16.msra.mxu0 0
    %222 = vmatprep.subr.bf16.mxu0 0
    %223 = vmatpush1.bf16.msra.mxu0 0
    %224 = vmatprep.subr.bf16.mxu0 0
    %225 = vmatpush1.bf16.msra.mxu0 0
    %226 = vmatprep.subr.bf16.mxu0 0
    %227 = vmatpush1.bf16.msra.mxu0 0
    %228 = vmatprep.mubr.bf16.mxu0 0
    %229 = vmatmul.mubr.bf16.gmra.mrb[0].mxu0 %v124
    %v230 = vpop.f32.mrb[0].mxu0
    %v231 = vadd.f32 %v146, %v230
    %v232 = vpop.f32.mrb[0].mxu0
    %v233 = vpop.f32.mrb[0].mxu0
    %v234 = vadd.f32 %v146, %v233
    %v235 = vpop.f32.mrb[0].mxu0
    %236 = vdwg.mxu0
    %v237 = vmax.f32 %v231, 0.0
    %v238 = vmax.f32 %v234, 0.0
    %v239 = vld [vmem:[#allocation2] sm:$0xff]
    %v240 = vld [vmem:[#allocation2 + $0x8] sm:$0xff]
    %v241 = vpack.c.bf16 %v238, %v237
    %v242 = vld [vmem:[#allocation9] sm:$0xf]
    %v243 = vld [vmem:[#allocation9 + $0x4] sm:$0xf]
    %v244 = vld [vmem:[#allocation9 + $0x8] sm:$0xf]
    %v245 = vld [vmem:[#allocation9 + $0xc] sm:$0xf]
    %v246 = vld [vmem:[#allocation9 + $0x10] sm:$0xf]
    %v247 = vld [vmem:[#allocation9 + $0x14] sm:$0xf]
    %v248 = vld [vmem:[#allocation9 + $0x18] sm:$0xf]
    %v249 = vld [vmem:[#allocation9 + $0x1c] sm:$0xf]
    %v250 = vld [vmem:[#allocation9 + $0x20] sm:$0xf]
    %v251 = vld [vmem:[#allocation9 + $0x24] sm:$0xf]
    %v252 = vld [vmem:[#allocation9 + $0x28] sm:$0xf]
    %v253 = vld [vmem:[#allocation9 + $0x2c] sm:$0xf]
    %v254 = vld [vmem:[#allocation9 + $0x30] sm:$0xf]
    %v255 = vld [vmem:[#allocation9 + $0x34] sm:$0xf]
    %v256 = vld [vmem:[#allocation9 + $0x38] sm:$0xf]
    %v257 = vld [vmem:[#allocation9 + $0x3c] sm:$0xf]
    %v274 = vunpack.c.l.b16 %v242
    %v275 = vunpack.c.l.b16 %v243
    %v276 = vunpack.c.l.b16 %v244
    %v277 = vunpack.c.l.b16 %v245
    %v278 = vunpack.c.l.b16 %v246
    %v279 = vunpack.c.l.b16 %v247
    %v280 = vunpack.c.l.b16 %v248
    %v281 = vunpack.c.l.b16 %v249
    %v282 = vunpack.c.l.b16 %v250
    %v283 = vunpack.c.l.b16 %v251
    %v284 = vunpack.c.l.b16 %v252
    %v285 = vunpack.c.l.b16 %v253
    %v286 = vunpack.c.l.b16 %v254
    %v287 = vunpack.c.l.b16 %v255
    %v288 = vunpack.c.l.b16 %v256
    %v289 = vunpack.c.l.b16 %v257
    %v290 = vpack.c.b16 %v275, %v274
    %v291 = vpack.c.b16 %v277, %v276
    %v292 = vpack.c.b16 %v279, %v278
    %v293 = vpack.c.b16 %v281, %v280
    %v294 = vpack.c.b16 %v283, %v282
    %v295 = vpack.c.b16 %v285, %v284
    %v296 = vpack.c.b16 %v287, %v286
    %v297 = vpack.c.b16 %v289, %v288
    %306 = vmatprep.subr.bf16.mxu0 0
    %307 = vmatpush1.bf16.msra.mxu0 %v290
    %308 = vmatprep.subr.bf16.mxu0 0
    %309 = vmatpush1.bf16.msra.mxu0 %v291
    %310 = vmatprep.subr.bf16.mxu0 0
    %311 = vmatpush1.bf16.msra.mxu0 %v292
    %312 = vmatprep.subr.bf16.mxu0 0
    %313 = vmatpush1.bf16.msra.mxu0 %v293
    %314 = vmatprep.subr.bf16.mxu0 0
    %315 = vmatpush1.bf16.msra.mxu0 %v294
    %316 = vmatprep.subr.bf16.mxu0 0
    %317 = vmatpush1.bf16.msra.mxu0 %v295
    %318 = vmatprep.subr.bf16.mxu0 0
    %319 = vmatpush1.bf16.msra.mxu0 %v296
    %320 = vmatprep.subr.bf16.mxu0 0
    %321 = vmatpush1.bf16.msra.mxu0 %v297
    %322 = vmatprep.subr.bf16.mxu0 0
    %323 = vmatpush1.bf16.msra.mxu0 0
    %324 = vmatprep.subr.bf16.mxu0 0
    %325 = vmatpush1.bf16.msra.mxu0 0
    %326 = vmatprep.subr.bf16.mxu0 0
    %327 = vmatpush1.bf16.msra.mxu0 0
    %328 = vmatprep.subr.bf16.mxu0 0
    %329 = vmatpush1.bf16.msra.mxu0 0
    %330 = vmatprep.subr.bf16.mxu0 0
    %331 = vmatpush1.bf16.msra.mxu0 0
    %332 = vmatprep.subr.bf16.mxu0 0
    %333 = vmatpush1.bf16.msra.mxu0 0
    %334 = vmatprep.subr.bf16.mxu0 0
    %335 = vmatpush1.bf16.msra.mxu0 0
    %336 = vmatprep.subr.bf16.mxu0 0
    %337 = vmatpush1.bf16.msra.mxu0 0
    %338 = vmatprep.mubr.bf16.mxu0 0
    %339 = vmatmul.mubr.bf16.gmra.mrb[0].mxu0 %v241
    %v340 = vpop.f32.mrb[0].mxu0
    %v341 = vadd.f32 0.0, %v340
    %v342 = vpop.f32.mrb[0].mxu0
    %v343 = vpop.f32.mrb[0].mxu0
    %v344 = vadd.f32 0.0, %v343
    %v345 = vpop.f32.mrb[0].mxu0
    %346 = vdwg.mxu0
    %v347 = vadd.f32 %v239, %v341
    %v348 = vadd.f32 %v240, %v344
    %349 = vst [vmem:[#allocation2] sm:$0xff] %v347
    %350 = vst [vmem:[#allocation2 + $0x8] sm:$0xff] %v348
    // Predicated region
    $region46: #{tpu_custom_call.1} parent=1 // pred_check
      %p351 = pneg %p69
    $region47: #{tpu_custom_call.1} parent=1 // pred_check_branch
      %353 = sbr.rel (%p351) target = $region49
    $region48: #{tpu_custom_call.1} parent=1 // pred_region
      %v354 = vld [vmem:[#allocation2] sm:$0xff]
      %v355 = vld [vmem:[#allocation2 + $0x8] sm:$0xff]
      %v356 = vld [vmem:[%s6] sm:$0x1]
      %v358 = vlaneseq
      %v359 = vshrl.u32 %v358, 7
      %v360 = vsub.s32 0, %v359
      %v361 = vrot.slane %v356, %v360
      %v363 = vadd.f32 %v354, %v361
      %v364 = vadd.f32 %v355, %v361
      %v365 = vld [vmem:[#allocation4] sm:$0xff]
      %v366 = vld [vmem:[#allocation4 + $0x8] sm:$0xff]
      %v367 = vadd.f32 %v363, %v365
      %v368 = vadd.f32 %v364, %v366
      %369 = vst [vmem:[#allocation10] sm:$0xff] %v367
      %370 = vst [vmem:[#allocation10 + $0x8] sm:$0xff] %v368
    $region49: #{tpu_custom_call.1} parent=1 // pred_fallthru
      _
    // Predicated region
    $region50: #{tpu_custom_call.1} parent=1 // pred_check
      _
    $region51: #{tpu_custom_call.1} parent=1 // pred_check_branch
      %372 = sbr.rel (0) target = $region53
    $region52: #{tpu_custom_call.1} parent=1 // pred_region
      %s374 = ssub.s32 256, 256
      %375 = vsyncadd [#allocation6], %s374
      %s376 = sshll.u32 [#allocation10], 4
      %s377 = int_to_ptr.vmem [resolvable:$true] %s376
      %382 = dma.vmem_to_hbm [thread:$0]  %s377, 256, %s7, [#allocation6], 128, 128, 8
    $region53: #{tpu_custom_call.1} parent=1 // pred_fallthru
      _
    // Predicated region
    $region54: #{tpu_custom_call.1} parent=1 // pred_check
      _
    $region55: #{tpu_custom_call.1} parent=1 // pred_check_branch
      %384 = sbr.rel (0) target = $region57
    $region56: #{tpu_custom_call.1} parent=1 // pred_region
      %385 = dma.done [#allocation6], 256
    $region57: #{tpu_custom_call.1} parent=1 // pred_fallthru
      _
    %386 = vsyncpa [#allocation5], 1
    %387 = vsyncpa [#allocation8], 1
    %388 = vsyncpa [#allocation6], 1

</llo_original>
